<compile_context>
chip_gen: v7x
topology: tpu7x:2x2x1
jax: 0.10.0
libtpu: 0.0.40
codegen_flags: <defaults>
</compile_context>

<pallas_src>
import math

import jax
import jax.numpy as jnp
from jax.experimental import pallas as pl
from jax.experimental.pallas import tpu as pltpu

C = 3  # RGB channels (UAP has num_channels=3)

_MEAN = (0.485, 0.456, 0.406)
_STD = (0.229, 0.224, 0.225)

_LANE = 128
_VREG_ELEMS = 8 * _LANE  # 1024


# ---------------------------------------------------------------------------
# Layout / sizing helpers
# ---------------------------------------------------------------------------
def _vmem_budget_and_limit():
    """Per-generation VMEM budget (tile sizing) and scoped VMEM limit."""
    try:
        cap = pltpu.get_tpu_info().vmem_capacity_bytes
    except Exception:
        cap = 64 * 1024 * 1024  # conservative fallback: assume v7x (64 MiB)
    if cap >= 96 * 1024 * 1024:                # v5e / v6e: 128 MiB physical
        return 56 * 1024 * 1024, 80 * 1024 * 1024
    return 36 * 1024 * 1024, 48 * 1024 * 1024  # v7x: 64 MiB physical


def _padded_geometry(c, h, w):
    """true flat length, padded flat length (multiple of 8*128), padded rows."""
    t = c * h * w
    p = ((t + _VREG_ELEMS - 1) // _VREG_ELEMS) * _VREG_ELEMS
    return t, p, p // _LANE


def _flatten_pad(a, rows):
    """(N, C, H, W) -> zero-padded lane-dense (N, rows, 128)."""
    n = a.shape[0]
    t = a.shape[1] * a.shape[2] * a.shape[3]
    p = rows * _LANE
    flat = a.reshape(n, t)
    if p != t:
        flat = jnp.pad(flat, ((0, 0), (0, p - t)))
    return flat.reshape(n, rows, _LANE)


def _unflatten(a, n, c, h, w):
    t = c * h * w
    return a.reshape(n, -1)[:, :t].reshape(n, c, h, w)


def _norm_maps(c, h, w, rows):
    """Per-element maps so that out = clamp(x+uap,0,1) * scale + bias."""
    mean = jnp.array(_MEAN, jnp.float32).reshape(c, 1, 1)
    inv_std = jnp.array([1.0 / s for s in _STD], jnp.float32).reshape(c, 1, 1)
    scale = jnp.broadcast_to(inv_std, (c, h, w))
    bias = jnp.broadcast_to(-mean * inv_std, (c, h, w))
    return _flatten_pad(scale[None], rows), _flatten_pad(bias[None], rows)


def _pick_tile_n(n, per_image_bytes, resident_bytes, budget):
    tile_n = max(1, int((budget - resident_bytes) // max(per_image_bytes, 1)))
    tile_n = min(tile_n, n)
    if n > 1:
        # ensure >= 2 grid steps so the batch axis can span both v7x
        # TensorCores; negligible extra per-step cost on v5e/v6e (1 TC).
        tile_n = min(tile_n, pl.cdiv(n, 2))
    return max(1, tile_n)


# ---------------------------------------------------------------------------
# Kernel 1: adv = clamp(x + uap, 0, 1);  out = adv * scale + bias
#   x_ref     : (tile_n, rows, 128)   bf16 (default) image block
#   uap_ref   : (1,      rows, 128)   f32, resident across the batch grid
#   scale/bias: (1,      rows, 128)   f32, resident (per-element 1/std, -mean/std)
# ---------------------------------------------------------------------------
def _uap_norm_kernel(x_ref, uap_ref, scale_ref, bias_ref, o_ref):
    adv = jnp.clip(x_ref[...].astype(jnp.float32) + uap_ref[...], 0.0, 1.0)
    o_ref[...] = (adv * scale_ref[...] + bias_ref[...]).astype(o_ref.dtype)


def uap_apply_normalize(x_nchw, uap_nchw, *, in_dtype=jnp.bfloat16,
                        out_dtype=jnp.bfloat16):
    """x: (N, C, H, W) images in [0,1]; uap: (1, C, H, W) perturbation.

    Default bf16 image I/O halves HBM traffic on this bandwidth-bound pass;
    pass in_dtype=out_dtype=jnp.float32 for an exact path.  Math is f32
    in-kernel either way; mean/std are baked in (documented deviation from
    the f32 PyTorch normalize only when bf16 output is used).
    """
    n, c, h, w = x_nchw.shape
    idt = x_nchw.dtype if in_dtype is None else jnp.dtype(in_dtype)
    odt = jnp.dtype(out_dtype)
    _, p, rows = _padded_geometry(c, h, w)

    x = _flatten_pad(x_nchw.astype(idt), rows)
    uap = _flatten_pad(uap_nchw.astype(jnp.float32), rows)
    scale, bias = _norm_maps(c, h, w, rows)

    budget, vmem_limit = _vmem_budget_and_limit()
    per_image = p * 2 * (jnp.dtype(idt).itemsize + odt.itemsize)  # dbl-buffered
    resident = 3 * p * 4 * 2                                      # uap/scale/bias
    tile_n = _pick_tile_n(n, per_image, resident, budget)

    out = pl.pallas_call(
        _uap_norm_kernel,
        out_shape=jax.ShapeDtypeStruct((n, rows, _LANE), odt),
        grid_spec=pltpu.PrefetchScalarGridSpec(
            num_scalar_prefetch=0,
            grid=(pl.cdiv(n, tile_n),),
            in_specs=[
                pl.BlockSpec((tile_n, rows, _LANE), lambda i: (i, 0, 0)),
                pl.BlockSpec((1, rows, _LANE), lambda i: (0, 0, 0)),
                pl.BlockSpec((1, rows, _LANE), lambda i: (0, 0, 0)),
                pl.BlockSpec((1, rows, _LANE), lambda i: (0, 0, 0)),
            ],
            out_specs=pl.BlockSpec((tile_n, rows, _LANE), lambda i: (i, 0, 0)),
        ),
        compiler_params=pltpu.CompilerParams(
            dimension_semantics=("parallel",),   # v7x: 2 TCs split the batch
            vmem_limit_bytes=vmem_limit,
        ),
    )(x, uap, scale, bias)
    return _unflatten(out, n, c, h, w)


# ---------------------------------------------------------------------------
# Kernel 2: keepGradUpdate — single Adam step from zero moments + eps-ball clamp
#   exp_avg    = (1-beta1) * g
#   exp_avg_sq = (1-beta2) * g*g + 1e-8   (the 1e-8 floor is added BEFORE sqrt,
#                                          in addition to adam_eps after — as in
#                                          the PyTorch code)
#   denom      = sqrt(exp_avg_sq)/sqrt(1-beta2) + adam_eps
#   new        = clamp(noise - (lr/(1-beta1)) * exp_avg / denom, -eps, eps)
# Exact divide (no approx reciprocal): this kernel is launch-bound, and the
# optimizer trajectory must match the reference.
# ---------------------------------------------------------------------------
def make_keep_grad_update(lr, epsilon, beta1=0.9, beta2=0.999, adam_eps=1e-8,
                          weight_decay=0.0):
    step_size = lr / (1.0 - beta1)
    inv_sqrt_bc2 = 1.0 / math.sqrt(1.0 - beta2)

    def _kernel(noise_ref, grad_ref, o_ref):
        g = grad_ref[...]
        nse = noise_ref[...]
        if weight_decay != 0.0:
            g = g + weight_decay * nse
        exp_avg = (1.0 - beta1) * g
        exp_avg_sq = (1.0 - beta2) * g * g + 1e-8
        denom = jnp.sqrt(exp_avg_sq) * inv_sqrt_bc2 + adam_eps
        new = nse - step_size * exp_avg / denom
        o_ref[...] = jnp.clip(new, -epsilon, epsilon)

    def apply(noise_nchw, grad_nchw):
        nb, cb, hb, wb = noise_nchw.shape
        _, _, rows = _padded_geometry(cb, hb, wb)
        noise = _flatten_pad(noise_nchw.astype(jnp.float32), rows)
        grad = _flatten_pad(grad_nchw.astype(jnp.float32), rows)
        out = pl.pallas_call(
            _kernel,
            out_shape=jax.ShapeDtypeStruct(noise.shape, jnp.float32),
        )(noise, grad)
        return _unflatten(out, nb, cb, hb, wb).astype(noise_nchw.dtype)

    return apply


# ---------------------------------------------------------------------------
# Kernel 3 (fused): keepGradUpdate + query-pass UAP/normalize in one launch.
# The UAP update is tiny, so it is recomputed per grid step from the resident
# noise/grad blocks; the new UAP is emitted as a second, resident output
# (same block index every step -> written back to HBM once at the end).
# The batch axis is "arbitrary" here because that resident output block is
# revisited every grid step.
# ---------------------------------------------------------------------------
def make_fused_update_and_normalize(lr, epsilon, beta1=0.9, beta2=0.999,
                                    adam_eps=1e-8, weight_decay=0.0, *,
                                    in_dtype=jnp.bfloat16,
                                    out_dtype=jnp.bfloat16):
    step_size = lr / (1.0 - beta1)
    inv_sqrt_bc2 = 1.0 / math.sqrt(1.0 - beta2)

    def _kernel(x_ref, noise_ref, grad_ref, scale_ref, bias_ref,
                o_ref, uap_out_ref):
        g = grad_ref[...]
        nse = noise_ref[...]
        if weight_decay != 0.0:
            g = g + weight_decay * nse
        exp_avg = (1.0 - beta1) * g
        exp_avg_sq = (1.0 - beta2) * g * g + 1e-8
        denom = jnp.sqrt(exp_avg_sq) * inv_sqrt_bc2 + adam_eps
        new_uap = jnp.clip(nse - step_size * exp_avg / denom, -epsilon, epsilon)
        uap_out_ref[...] = new_uap
        adv = jnp.clip(x_ref[...].astype(jnp.float32) + new_uap, 0.0, 1.0)
        o_ref[...] = (adv * scale_ref[...] + bias_ref[...]).astype(o_ref.dtype)

    def apply(x_nchw, noise_nchw, grad_nchw):
        n, c, h, w = x_nchw.shape
        idt = x_nchw.dtype if in_dtype is None else jnp.dtype(in_dtype)
        odt = jnp.dtype(out_dtype)
        _, p, rows = _padded_geometry(c, h, w)

        x = _flatten_pad(x_nchw.astype(idt), rows)
        noise = _flatten_pad(noise_nchw.astype(jnp.float32), rows)
        grad = _flatten_pad(grad_nchw.astype(jnp.float32), rows)
        scale, bias = _norm_maps(c, h, w, rows)

        budget, vmem_limit = _vmem_budget_and_limit()
        per_image = p * 2 * (jnp.dtype(idt).itemsize + odt.itemsize)
        resident = 5 * p * 4 * 2   # noise + grad + scale + bias + uap output
        tile_n = _pick_tile_n(n, per_image, resident, budget)

        out, new_uap = pl.pallas_call(
            _kernel,
            out_shape=(jax.ShapeDtypeStruct((n, rows, _LANE), odt),
                       jax.ShapeDtypeStruct((1, rows, _LANE), jnp.float32)),
            grid_spec=pltpu.PrefetchScalarGridSpec(
                num_scalar_prefetch=0,
                grid=(pl.cdiv(n, tile_n),),
                in_specs=[
                    pl.BlockSpec((tile_n, rows, _LANE), lambda i: (i, 0, 0)),
                    pl.BlockSpec((1, rows, _LANE), lambda i: (0, 0, 0)),
                    pl.BlockSpec((1, rows, _LANE), lambda i: (0, 0, 0)),
                    pl.BlockSpec((1, rows, _LANE), lambda i: (0, 0, 0)),
                    pl.BlockSpec((1, rows, _LANE), lambda i: (0, 0, 0)),
                ],
                out_specs=[
                    pl.BlockSpec((tile_n, rows, _LANE), lambda i: (i, 0, 0)),
                    pl.BlockSpec((1, rows, _LANE), lambda i: (0, 0, 0)),
                ],
            ),
            compiler_params=pltpu.CompilerParams(
                dimension_semantics=("arbitrary",),
                vmem_limit_bytes=vmem_limit,
            ),
        )(x, noise, grad, scale, bias)
        return _unflatten(out, n, c, h, w), _unflatten(new_uap, 1, c, h, w)

    return apply


# ---------------------------------------------------------------------------
# Pure-JAX references for correctness checking
# ---------------------------------------------------------------------------
def _ref_uap_norm(x, uap):
    adv = jnp.clip(x + uap, 0.0, 1.0)
    mean = jnp.array(_MEAN, jnp.float32).reshape(1, C, 1, 1)
    std = jnp.array(_STD, jnp.float32).reshape(1, C, 1, 1)
    return (adv - mean) / std


def _ref_keep_grad_update(noise, grad, lr, epsilon, beta1=0.9, beta2=0.999,
                          adam_eps=1e-8):
    exp_avg = (1.0 - beta1) * grad
    exp_avg_sq = (1.0 - beta2) * grad * grad + 1e-8
    denom = jnp.sqrt(exp_avg_sq) / jnp.sqrt(1.0 - beta2) + adam_eps
    new = noise - (lr / (1.0 - beta1)) * exp_avg / denom
    return jnp.clip(new, -epsilon, epsilon)


if __name__ == "__main__":
    key = jax.random.PRNGKey(0)
    kx, kg = jax.random.split(key)

    B, H, W = 4, 16, 16                  # small shapes: batch=4, 3x16x16 images
    epsilon = 10.0 / 255.0
    lr = 0.01

    x = jax.random.uniform(kx, (B, C, H, W), dtype=jnp.float32)   # images in [0,1]
    uap = jnp.zeros((1, C, H, W), dtype=jnp.float32)              # UAP param init
    # TODO(synk): in the real module `grad` comes from autograd through the
    # surrogate classifiers (`arch`) + cross-entropy criterion; synthesized here.
    grad = 0.1 * jax.random.normal(kg, (1, C, H, W), dtype=jnp.float32)

    # support / query split as in Meta.forward
    size = B // 2
    sup_set, query_set = x[:size], x[size:]

    # pure-JAX references
    ref_sup = _ref_uap_norm(sup_set, uap)
    ref_uap = _ref_keep_grad_update(uap, grad, lr, epsilon)
    ref_qry = _ref_uap_norm(query_set, ref_uap)

    # arch(normalize(clamp(net(sup_set), 0, 1)))  -> input prepared by Pallas
    # TODO(synk): the random DI() resize/pad augmentation and the `arch`
    # classifiers themselves are not implemented (data-dependent resize /
    # external nets).
    sup_adv_norm = uap_apply_normalize(sup_set, uap)                      # bf16 I/O
    sup_adv_norm_f32 = uap_apply_normalize(sup_set, uap,
                                           in_dtype=jnp.float32,
                                           out_dtype=jnp.float32)         # exact

    # standalone keepGradUpdate (exact Adam step)
    keep_grad_update = make_keep_grad_update(lr=lr, epsilon=epsilon)
    new_uap = keep_grad_update(uap, grad)

    # fused: UAP update + query-pass normalize in a single pallas_call
    fused = make_fused_update_and_normalize(lr=lr, epsilon=epsilon)
    qry_adv_norm, new_uap_fused = fused(query_set, uap, grad)

    jax.block_until_ready((sup_adv_norm, sup_adv_norm_f32, new_uap,
                           qry_adv_norm, new_uap_fused))

    # correctness vs pure-JAX reference
    assert jnp.allclose(sup_adv_norm_f32, ref_sup, atol=1e-5), \
        "uap_apply_normalize (f32 path) mismatch"
    # bf16 image I/O -> ~1e-2 rounding on normalized outputs
    assert jnp.allclose(sup_adv_norm.astype(jnp.float32), ref_sup, atol=3e-2), \
        "uap_apply_normalize (bf16 path) mismatch"
    assert jnp.allclose(new_uap, ref_uap, atol=1e-6), "keepGradUpdate mismatch"
    assert jnp.allclose(new_uap_fused, ref_uap, atol=1e-6), \
        "fused keepGradUpdate mismatch"
    assert jnp.allclose(qry_adv_norm.astype(jnp.float32), ref_qry, atol=3e-2), \
        "fused query pass mismatch"

    print("KERNEL_OK")
</pallas_src>

<mosaic_0001>
module attributes {stable_mosaic.version = 11 : i64} {
  func.func @_uap_norm_kernel(%arg0: i32, %arg1: memref<1x8x128xbf16, #tpu.memory_space<vmem>>, %arg2: memref<1x8x128xf32, #tpu.memory_space<vmem>>, %arg3: memref<1x8x128xf32, #tpu.memory_space<vmem>>, %arg4: memref<1x8x128xf32, #tpu.memory_space<vmem>>, %arg5: memref<1x8x128xbf16, #tpu.memory_space<vmem>>) attributes {dimension_semantics = [#tpu.dimension_semantics<parallel>], iteration_bounds = array<i64: 2>, scalar_prefetch = 0 : i64, scratch_operands = 0 : i64, tpu.core_type = #tpu.core_type<tc>, window_params = [{transform_indices = @transform_0, window_bounds = array<i64: 1, 8, 128>}, {pipeline_mode = #tpu.pipeline_mode<synchronous>, transform_indices = @transform_1, window_bounds = array<i64: 1, 8, 128>}, {pipeline_mode = #tpu.pipeline_mode<synchronous>, transform_indices = @transform_2, window_bounds = array<i64: 1, 8, 128>}, {pipeline_mode = #tpu.pipeline_mode<synchronous>, transform_indices = @transform_3, window_bounds = array<i64: 1, 8, 128>}, {transform_indices = @transform_4, window_bounds = array<i64: 1, 8, 128>}]} {
    %c0 = arith.constant 0 : index
    %c0_0 = arith.constant 0 : index
    %c0_1 = arith.constant 0 : index
    %0 = vector.load %arg1[%c0, %c0_0, %c0_1] : memref<1x8x128xbf16, #tpu.memory_space<vmem>>, vector<1x8x128xbf16>
    %1 = arith.extf %0 : vector<1x8x128xbf16> to vector<1x8x128xf32>
    %c0_2 = arith.constant 0 : index
    %c0_3 = arith.constant 0 : index
    %c0_4 = arith.constant 0 : index
    %2 = vector.load %arg2[%c0_2, %c0_3, %c0_4] : memref<1x8x128xf32, #tpu.memory_space<vmem>>, vector<1x8x128xf32>
    %3 = arith.addf %1, %2 : vector<1x8x128xf32>
    %cst = arith.constant 0.000000e+00 : f32
    %cst_5 = arith.constant 1.000000e+00 : f32
    %4 = vector.broadcast %cst : f32 to vector<1x8x128xf32>
    %5 = arith.maximumf %4, %3 : vector<1x8x128xf32>
    %6 = vector.broadcast %cst_5 : f32 to vector<1x8x128xf32>
    %7 = arith.minimumf %6, %5 : vector<1x8x128xf32>
    %c0_6 = arith.constant 0 : index
    %c0_7 = arith.constant 0 : index
    %c0_8 = arith.constant 0 : index
    %8 = vector.load %arg3[%c0_6, %c0_7, %c0_8] : memref<1x8x128xf32, #tpu.memory_space<vmem>>, vector<1x8x128xf32>
    %9 = arith.mulf %7, %8 : vector<1x8x128xf32>
    %c0_9 = arith.constant 0 : index
    %c0_10 = arith.constant 0 : index
    %c0_11 = arith.constant 0 : index
    %10 = vector.load %arg4[%c0_9, %c0_10, %c0_11] : memref<1x8x128xf32, #tpu.memory_space<vmem>>, vector<1x8x128xf32>
    %11 = arith.addf %9, %10 : vector<1x8x128xf32>
    %12 = arith.truncf %11 : vector<1x8x128xf32> to vector<1x8x128xbf16>
    %c0_12 = arith.constant 0 : index
    %c0_13 = arith.constant 0 : index
    %c0_14 = arith.constant 0 : index
    %13 = vector.load %arg5[%c0_12, %c0_13, %c0_14] : memref<1x8x128xbf16, #tpu.memory_space<vmem>>, vector<1x8x128xbf16>
    tpu.vector_store %arg5[%c0_12, %c0_13, %c0_14], %12 {strides = array<i32>} : memref<1x8x128xbf16, #tpu.memory_space<vmem>>, vector<1x8x128xbf16>,
    return
  }
  func.func @transform_0(%arg0: i32) -> (i32, i32, i32) {
    %c0_i32 = arith.constant 0 : i32
    %c0_i32_0 = arith.constant 0 : i32
    %c0_i32_1 = arith.constant 0 : i32
    return %arg0, %c0_i32, %c0_i32_0 : i32, i32, i32
  }
  func.func @transform_1(%arg0: i32) -> (i32, i32, i32) {
    %c0_i32 = arith.constant 0 : i32
    %c0_i32_0 = arith.constant 0 : i32
    %c0_i32_1 = arith.constant 0 : i32
    %c0_i32_2 = arith.constant 0 : i32
    return %c0_i32, %c0_i32_0, %c0_i32_1 : i32, i32, i32
  }
  func.func @transform_2(%arg0: i32) -> (i32, i32, i32) {
    %c0_i32 = arith.constant 0 : i32
    %c0_i32_0 = arith.constant 0 : i32
    %c0_i32_1 = arith.constant 0 : i32
    %c0_i32_2 = arith.constant 0 : i32
    return %c0_i32, %c0_i32_0, %c0_i32_1 : i32, i32, i32
  }
  func.func @transform_3(%arg0: i32) -> (i32, i32, i32) {
    %c0_i32 = arith.constant 0 : i32
    %c0_i32_0 = arith.constant 0 : i32
    %c0_i32_1 = arith.constant 0 : i32
    %c0_i32_2 = arith.constant 0 : i32
    return %c0_i32, %c0_i32_0, %c0_i32_1 : i32, i32, i32
  }
  func.func @transform_4(%arg0: i32) -> (i32, i32, i32) {
    %c0_i32 = arith.constant 0 : i32
    %c0_i32_0 = arith.constant 0 : i32
    %c0_i32_1 = arith.constant 0 : i32
    return %arg0, %c0_i32, %c0_i32_0 : i32, i32, i32
  }
}

</mosaic_0001>

<llo_original>
// kernel: tpu_custom_call.1
$region0: #{tpu_custom_call.1}
  #allocation0 [shape = 'u32[]', space=smem, size = 0x4, offset = 0x4, fixed_abs, tag = 'smem constant byte address 0x4 - core index']
  #allocation1 [shape = 'u32[144,128]{1,0:T(1,128)}', space=vmem, size = 0x12000, scoped, tag = 'internal scratch']
  %s0 = inlined_call_operand.hbm [shape: bf16[2,8,128], index: 0, kind: input, shape index: {}]
  %s1 = inlined_call_operand.hbm [shape: f32[1,8,128], index: 1, kind: input, shape index: {}]
  %s2 = inlined_call_operand.hbm [shape: f32[1,8,128], index: 2, kind: input, shape index: {}]
  %s3 = inlined_call_operand.vmem [shape: f32[1,8,128], index: 3, kind: input, shape index: {}]
  %s4 = inlined_call_operand.hbm [shape: bf16[2,8,128], index: 4, kind: output, shape index: {}]
  %s5 = sld [smem:[#allocation0]]
  $region61: #{tpu_custom_call.1} parent=0
    _
  %s7 = ssub.s32 1, %s5
  %s8 = scalar_select 0, %s7, %s5
  $region1: #{tpu_custom_call.1} parent=0
    #allocation2 [shape = 'u8[4096]{0}', space=vmem, size = 0x1000, scoped, tag = 'input window, operand 0']
    #allocation3 [shape = 's32[2]{0}', space=sflag, size = 0x8, scoped, tag = 'scoped memory for tpu_custom_call.1']
    #allocation4 [shape = 's32[2]{0}', space=sflag, size = 0x8, scoped, tag = 'scoped memory for tpu_custom_call.1']
    #allocation5 [shape = 'u8[4096]{0}', space=vmem, size = 0x1000, scoped, tag = 'input window, operand 1, single buffered']
    #allocation6 [shape = 's32[1]{0}', space=sflag, size = 0x4, scoped, tag = 'scoped memory for tpu_custom_call.1']
    #allocation7 [shape = 'u8[4096]{0}', space=vmem, size = 0x1000, scoped, tag = 'input window, operand 2, single buffered']
    #allocation8 [shape = 'u8[4096]{0}', space=vmem, size = 0x1000, scoped, tag = 'output window, operand 0']
    %9 = vsyncpa [#allocation3], 0
    %s10 = scalar_lea.sflag [#allocation3], 1
    %11 = vsyncpa %s10, 0
    %12 = vsyncpa [#allocation6], 0
    %13 = vsyncpa [#allocation4], 0
    %s14 = scalar_lea.sflag [#allocation4], 1
    %15 = vsyncpa %s14, 0
    loop: start=0, step=1, limit=4
    $region2: #{tpu_custom_call.1} parent=1 // loop_pre_header
      _
    $region3: #{tpu_custom_call.1} parent=1 // loop_header
      %s17 = sphi 0, %s21
      %p18 = scmp.ge.s32.totalorder %s17, 4
      %s27 = sphi 0, %s29
      %s30 = sphi 0, %s27
      %s31 = sphi 0, %s30
      %s47 = sphi 0, %s31
      %s51 = sphi 0, %s51
      %s53 = sphi 0, %s51
      %s54 = sphi 0, %s53
      %s68 = sphi 0, %s54
      %s72 = sphi 0, %s72
      %s74 = sphi 0, %s72
      %s75 = sphi 0, %s74
      %s89 = sphi 0, %s75
      %s93 = sphi 0, %s93
      %s95 = sphi 0, %s93
      %s96 = sphi 0, %s95
      %s110 = sphi 0, %s96
      %s116 = sphi 0, %s118
      %s119 = sphi 0, %s116
      %s120 = sphi 0, %s119
      %s136 = sphi 0, %s120
    $region4: #{tpu_custom_call.1} parent=1 // loop_header_branch
      %20 = sbr.rel (%p18) target = $region8
    $region5: #{tpu_custom_call.1} parent=1 // loop_body
      %s22 = ssub.s32 %s17, 1
      %s23 = ssub.s32 %s17, 2
      %s24 = sadd.s32 %s17, 1
      %s25 = ssub.s32 %s17, %s24
      %p26 = scmp.eq.s32.totalorder %s25, 0
      %s28 = sadd.s32 %s27, 1
      %s29 = scalar_select %p26, %s27, %s28
      %p32 = pneg %p26
      %p33 = scmp.eq.s32.totalorder %s17, 1
      %p34 = por %p32, %p33
      %p35 = scmp.ne.s32.totalorder %s27, %s30
      %p36 = scmp.eq.s32.totalorder %s17, 0
      %p37 = por %p35, %p36
      %p38 = scmp.ne.s32.totalorder %s27, %s30
      %p39 = scmp.eq.s32.totalorder %s22, 1
      %p40 = por %p38, %p39
      %p41 = scmp.ne.s32.totalorder %s30, %s31
      %p42 = scmp.eq.s32.totalorder %s22, 0
      %p43 = por %p41, %p42
      %p44 = scmp.ne.s32.totalorder %s30, %s31
      %p45 = scmp.eq.s32.totalorder %s23, 1
      %p46 = por %p44, %p45
      %p48 = scmp.ne.s32.totalorder %s31, %s47
      %p49 = scmp.eq.s32.totalorder %s23, 0
      %p50 = por %p48, %p49
      %s52 = sadd.s32 %s51, 1
      %p55 = scmp.eq.s32.totalorder %s17, 1
      %p56 = scmp.ne.s32.totalorder %s51, %s53
      %p57 = scmp.eq.s32.totalorder %s17, 0
      %p58 = por %p56, %p57
      %p59 = scmp.ne.s32.totalorder %s51, %s53
      %p60 = scmp.eq.s32.totalorder %s22, 1
      %p61 = por %p59, %p60
      %p62 = scmp.ne.s32.totalorder %s53, %s54
      %p63 = scmp.eq.s32.totalorder %s22, 0
      %p64 = por %p62, %p63
      %p65 = scmp.ne.s32.totalorder %s53, %s54
      %p66 = scmp.eq.s32.totalorder %s23, 1
      %p67 = por %p65, %p66
      %p69 = scmp.ne.s32.totalorder %s54, %s68
      %p70 = scmp.eq.s32.totalorder %s23, 0
      %p71 = por %p69, %p70
      %s73 = sadd.s32 %s72, 1
      %p76 = scmp.eq.s32.totalorder %s17, 1
      %p77 = scmp.ne.s32.totalorder %s72, %s74
      %p78 = scmp.eq.s32.totalorder %s17, 0
      %p79 = por %p77, %p78
      %p80 = scmp.ne.s32.totalorder %s72, %s74
      %p81 = scmp.eq.s32.totalorder %s22, 1
      %p82 = por %p80, %p81
      %p83 = scmp.ne.s32.totalorder %s74, %s75
      %p84 = scmp.eq.s32.totalorder %s22, 0
      %p85 = por %p83, %p84
      %p86 = scmp.ne.s32.totalorder %s74, %s75
      %p87 = scmp.eq.s32.totalorder %s23, 1
      %p88 = por %p86, %p87
      %p90 = scmp.ne.s32.totalorder %s75, %s89
      %p91 = scmp.eq.s32.totalorder %s23, 0
      %p92 = por %p90, %p91
      %s94 = sadd.s32 %s93, 1
      %p97 = scmp.eq.s32.totalorder %s17, 1
      %p98 = scmp.ne.s32.totalorder %s93, %s95
      %p99 = scmp.eq.s32.totalorder %s17, 0
      %p100 = por %p98, %p99
      %p101 = scmp.ne.s32.totalorder %s93, %s95
      %p102 = scmp.eq.s32.totalorder %s22, 1
      %p103 = por %p101, %p102
      %p104 = scmp.ne.s32.totalorder %s95, %s96
      %p105 = scmp.eq.s32.totalorder %s22, 0
      %p106 = por %p104, %p105
      %p107 = scmp.ne.s32.totalorder %s95, %s96
      %p108 = scmp.eq.s32.totalorder %s23, 1
      %p109 = por %p107, %p108
      %p111 = scmp.ne.s32.totalorder %s96, %s110
      %p112 = scmp.eq.s32.totalorder %s23, 0
      %p113 = por %p111, %p112
      %s114 = ssub.s32 %s17, %s24
      %p115 = scmp.eq.s32.totalorder %s114, 0
      %s117 = sadd.s32 %s116, 1
      %s118 = scalar_select %p115, %s116, %s117
      %p121 = pneg %p115
      %p122 = scmp.eq.s32.totalorder %s17, 1
      %p123 = por %p121, %p122
      %p124 = scmp.ne.s32.totalorder %s116, %s119
      %p125 = scmp.eq.s32.totalorder %s17, 0
      %p126 = por %p124, %p125
      %p127 = scmp.ne.s32.totalorder %s116, %s119
      %p128 = scmp.eq.s32.totalorder %s22, 1
      %p129 = por %p127, %p128
      %p130 = scmp.ne.s32.totalorder %s119, %s120
      %p131 = scmp.eq.s32.totalorder %s22, 0
      %p132 = por %p130, %p131
      %p133 = scmp.ne.s32.totalorder %s119, %s120
      %p134 = scmp.eq.s32.totalorder %s23, 1
      %p135 = por %p133, %p134
      %p137 = scmp.ne.s32.totalorder %s120, %s136
      %p138 = scmp.eq.s32.totalorder %s23, 0
      %p139 = por %p137, %p138
      %p140 = scmp.le.s32.totalorder 1, %s17
      %p141 = scmp.lt.s32.totalorder %s17, 3
      %p142 = pnand %p140, %p141
      %p143 = pneg %p142
      // Predicated region
      $region9: #{tpu_custom_call.1} parent=5 // pred_check
        _
      $region10: #{tpu_custom_call.1} parent=5 // pred_check_branch
        %145 = sbr.rel (%p142) target = $region12
      $region11: #{tpu_custom_call.1} parent=5 // pred_region
        %s146 = ssub.s32 %s17, 1
        // Predicated region
        $region13: #{tpu_custom_call.1} parent=11 // pred_check
          %p147 = pneg %p64
        $region14: #{tpu_custom_call.1} parent=11 // pred_check_branch
          %149 = sbr.rel (%p147) target = $region16
        $region15: #{tpu_custom_call.1} parent=11 // pred_region
          %s151 = ssub.s32 128, 128
          %152 = vsyncadd [#allocation6], %s151
          %s154 = sshll.u32 [#allocation5], 4
          %s155 = int_to_ptr.vmem [resolvable:$true] %s154
          %157 = dma.hbm_to_vmem [thread:$0]  %s1, 128, %s155, [#allocation6]
        $region16: #{tpu_custom_call.1} parent=11 // pred_fallthru
          _
        // Predicated region
        $region17: #{tpu_custom_call.1} parent=11 // pred_check
          %p158 = pneg %p85
        $region18: #{tpu_custom_call.1} parent=11 // pred_check_branch
          %160 = sbr.rel (%p158) target = $region20
        $region19: #{tpu_custom_call.1} parent=11 // pred_region
          %s162 = ssub.s32 128, 128
          %163 = vsyncadd [#allocation6], %s162
          %s165 = sshll.u32 [#allocation7], 4
          %s166 = int_to_ptr.vmem [resolvable:$true] %s165
          %168 = dma.hbm_to_vmem [thread:$0]  %s2, 128, %s166, [#allocation6]
        $region20: #{tpu_custom_call.1} parent=11 // pred_fallthru
          _
        // Predicated region
        $region21: #{tpu_custom_call.1} parent=11 // pred_check
          %p169 = pneg %p106
        $region22: #{tpu_custom_call.1} parent=11 // pred_check_branch
          %171 = sbr.rel (%p169) target = $region24
        $region23: #{tpu_custom_call.1} parent=11 // pred_region
          _
        $region24: #{tpu_custom_call.1} parent=11 // pred_fallthru
          _
      $region12: #{tpu_custom_call.1} parent=5 // pred_fallthru
        _
      %p172 = scmp.lt.s32.totalorder %s17, 2
      // Predicated region
      $region25: #{tpu_custom_call.1} parent=5 // pred_check
        %p173 = pneg %p172
      $region26: #{tpu_custom_call.1} parent=5 // pred_check_branch
        %175 = sbr.rel (%p173) target = $region28
      $region27: #{tpu_custom_call.1} parent=5 // pred_region
        // Predicated region
        $region29: #{tpu_custom_call.1} parent=27 // pred_check
          %p176 = pneg %p37
        $region30: #{tpu_custom_call.1} parent=27 // pred_check_branch
          %178 = sbr.rel (%p176) target = $region32
        $region31: #{tpu_custom_call.1} parent=27 // pred_region
          %s179 = sand.u32 %s27, 1
          %s180 = scalar_lea.sflag [#allocation3], %s179
          %s181 = sand.u32 %s27, 1
          %s182 = smul.addr %s181, 4
          %s183 = scalar_lea.vmem [#allocation2], %s182
          %s185 = ssub.s32 64, 64
          %186 = vsyncadd %s180, %s185
          %s187 = smul.addr %s17, 64
          %s188 = scalar_lea.hbm %s0, %s187
          %s190 = sshll.u32 %s183, 4
          %s191 = int_to_ptr.vmem [resolvable:$true] %s190
          %193 = dma.hbm_to_vmem [thread:$0]  %s188, 64, %s191, %s180
        $region32: #{tpu_custom_call.1} parent=27 // pred_fallthru
          _
      $region28: #{tpu_custom_call.1} parent=5 // pred_fallthru
        _
      %p194 = scmp.le.s32.totalorder 1, %s17
      %p195 = scmp.lt.s32.totalorder %s17, 3
      %p196 = pnand %p194, %p195
      %p197 = pneg %p196
      // Predicated region
      $region33: #{tpu_custom_call.1} parent=5 // pred_check
        _
      $region34: #{tpu_custom_call.1} parent=5 // pred_check_branch
        %199 = sbr.rel (%p196) target = $region36
      $region35: #{tpu_custom_call.1} parent=5 // pred_region
        %s200 = ssub.s32 %s17, 1
        %s201 = sand.u32 %s30, 1
        %s202 = scalar_lea.sflag [#allocation3], %s201
        %s203 = sand.u32 %s30, 1
        %s204 = smul.addr %s203, 4
        %s205 = scalar_lea.vmem [#allocation2], %s204
        // Predicated region
        $region37: #{tpu_custom_call.1} parent=35 // pred_check
          %p206 = pneg %p43
        $region38: #{tpu_custom_call.1} parent=35 // pred_check_branch
          %208 = sbr.rel (%p206) target = $region40
        $region39: #{tpu_custom_call.1} parent=35 // pred_region
          %209 = dma.done %s202, 64
        $region40: #{tpu_custom_call.1} parent=35 // pred_fallthru
          _
        // Predicated region
        $region41: #{tpu_custom_call.1} parent=35 // pred_check
          %p210 = pneg %p64
        $region42: #{tpu_custom_call.1} parent=35 // pred_check_branch
          %212 = sbr.rel (%p210) target = $region44
        $region43: #{tpu_custom_call.1} parent=35 // pred_region
          %213 = dma.done [#allocation6], 128
        $region44: #{tpu_custom_call.1} parent=35 // pred_fallthru
          _
        // Predicated region
        $region45: #{tpu_custom_call.1} parent=35 // pred_check
          %p214 = pneg %p85
        $region46: #{tpu_custom_call.1} parent=35 // pred_check_branch
          %216 = sbr.rel (%p214) target = $region48
        $region47: #{tpu_custom_call.1} parent=35 // pred_region
          %217 = dma.done [#allocation6], 128
        $region48: #{tpu_custom_call.1} parent=35 // pred_fallthru
          _
        %s218 = sand.u32 %s30, 1
        %s219 = scalar_lea.sflag [#allocation3], %s218
        %s220 = sand.u32 %s30, 1
        %s221 = smul.addr %s220, 4
        %s222 = scalar_lea.vmem [#allocation2], %s221
        %p223 = pneg %p43
        %p224 = pneg %p40
        %p225 = pneg %p64
        %p226 = pneg %p61
        %p227 = pneg %p85
        %p228 = pneg %p82
        %p229 = pneg %p106
        %p230 = pneg %p103
        %p231 = pneg %p132
        %p232 = pneg %p129
        %s233 = sand.u32 %s119, 1
        %s234 = scalar_lea.sflag [#allocation4], %s233
        %s235 = sand.u32 %s119, 1
        %s236 = smul.addr %s235, 4
        %s237 = scalar_lea.vmem [#allocation8], %s236
        %v238 = vld [vmem:[%s205] sm:$0xf]
        %v239 = vunpack.c.l.bf16 %v238
        %v240 = vld [vmem:[#allocation5] sm:$0xff]
        %v241 = vadd.f32 %v239, %v240
        %v242 = vmax.f32 %v241, 0.0
        %v243 = vmin.f32 %v242, 1.0
        %v244 = vld [vmem:[#allocation7] sm:$0xff]
        %v245 = vmul.f32 %v243, %v244
        %v246 = vld [vmem:[%s3] sm:$0xff]
        %v247 = vadd.f32 %v245, %v246
        %v248 = vpack.c.bf16 %v247, %v247
        %249 = vst [vmem:[%s237] sm:$0xf] %v248
        %s250 = sand.u32 %s119, 1
        %s251 = scalar_lea.sflag [#allocation4], %s250
        %s252 = sand.u32 %s119, 1
        %s253 = smul.addr %s252, 4
        %s254 = scalar_lea.vmem [#allocation8], %s253
        // Predicated region
        $region49: #{tpu_custom_call.1} parent=35 // pred_check
          %p255 = pneg %p129
        $region50: #{tpu_custom_call.1} parent=35 // pred_check_branch
          %257 = sbr.rel (%p255) target = $region52
        $region51: #{tpu_custom_call.1} parent=35 // pred_region
          %s259 = ssub.s32 64, 64
          %260 = vsyncadd %s251, %s259
          %s261 = smul.addr %s22, 64
          %s262 = scalar_lea.hbm %s4, %s261
          %s264 = sshll.u32 %s254, 4
          %s265 = int_to_ptr.vmem [resolvable:$true] %s264
          %267 = dma.vmem_to_hbm [thread:$0]  %s265, 64, %s262, %s251
        $region52: #{tpu_custom_call.1} parent=35 // pred_fallthru
          _
      $region36: #{tpu_custom_call.1} parent=5 // pred_fallthru
        _
      %p268 = scmp.le.s32.totalorder 2, %s17
      // Predicated region
      $region53: #{tpu_custom_call.1} parent=5 // pred_check
        %p269 = pneg %p268
      $region54: #{tpu_custom_call.1} parent=5 // pred_check_branch
        %271 = sbr.rel (%p269) target = $region56
      $region55: #{tpu_custom_call.1} parent=5 // pred_region
        %s272 = ssub.s32 %s17, 2
        // Predicated region
        $region57: #{tpu_custom_call.1} parent=55 // pred_check
          %p273 = pneg %p135
        $region58: #{tpu_custom_call.1} parent=55 // pred_check_branch
          %275 = sbr.rel (%p273) target = $region60
        $region59: #{tpu_custom_call.1} parent=55 // pred_region
          %s276 = sand.u32 %s120, 1
          %s277 = scalar_lea.sflag [#allocation4], %s276
          %s278 = sand.u32 %s120, 1
          %s279 = smul.addr %s278, 4
          %s280 = scalar_lea.vmem [#allocation8], %s279
          %281 = dma.done %s277, 64
        $region60: #{tpu_custom_call.1} parent=55 // pred_fallthru
          _
      $region56: #{tpu_custom_call.1} parent=5 // pred_fallthru
        _
    $region6: #{tpu_custom_call.1} parent=1 // loop_footer
      %s21 = sadd.s32 1, %s17
    $region7: #{tpu_custom_call.1} parent=1 // loop_footer_branch
      %16 = sbr.rel target = $region3
    $region8: #{tpu_custom_call.1} parent=1 // loop_exit
      _
    %282 = vsyncpa [#allocation3], 1
    %s283 = scalar_lea.sflag [#allocation3], 1
    %284 = vsyncpa %s283, 1
    %285 = vsyncpa [#allocation6], 1
    %286 = vsyncpa [#allocation4], 1
    %s287 = scalar_lea.sflag [#allocation4], 1
    %288 = vsyncpa %s287, 1

</llo_original>
